<compile_context>
chip_gen: v6e
topology: v6e:2x2x1
jax: 0.10.0
libtpu: 0.0.40
codegen_flags: <defaults>
</compile_context>

<pallas_src>
import functools
import math

import jax
import jax.numpy as jnp
from jax.experimental import pallas as pl
from jax.experimental.pallas import tpu as pltpu


def _round_up(x: int, m: int) -> int:
    return ((x + m - 1) // m) * m


def _pad_and_tile(dim: int, target: int):
    """Return (padded_dim, tile): tile is a multiple of 128 dividing padded_dim."""
    padded_small = _round_up(dim, 128)
    if padded_small <= target:
        return padded_small, padded_small          # single block covers the dim
    return _round_up(dim, target), target


def _pad2(a, rows: int, cols: int):
    """Zero-pad a 2-D array up to (rows, cols); no-op if already that shape."""
    pr, pc = rows - a.shape[0], cols - a.shape[1]
    if pr == 0 and pc == 0:
        return a
    return jnp.pad(a, ((0, pr), (0, pc)))


def _tpu_info():
    try:
        return pltpu.get_tpu_info()
    except Exception:
        return None


def _tpu_vmem_bytes() -> int:
    info = _tpu_info()
    if info is not None:
        for attr in ("vmem_capacity_bytes", "vmem_bytes", "vmem_size_bytes"):
            v = getattr(info, attr, None)
            if v:
                return int(v)
    return 64 * 1024 * 1024   # conservative fallback (v7x per-TensorCore VMEM)


def _tpu_cores_per_chip() -> int:
    info = _tpu_info()
    if info is not None:
        for attr in ("num_cores", "num_tensorcores", "cores_per_chip", "core_count"):
            v = getattr(info, attr, None)
            if v:
                return int(v)
    return 1


def _gcn_fused_kernel(x_ref, w_ref, adj_ref, b_ref, out_ref, support_ref, acc_ref):
    """One grid step of   out = adj @ (x @ w) + b   (bf16 MXU, f32 accumulation)."""
    i = pl.program_id(1)            # adj / output row tile
    k = pl.program_id(2)            # reduction tile (adj cols == support rows)
    n_k = pl.num_programs(2)

    tk = adj_ref.shape[1]           # static reduction tile size
    k_start = pl.multiple_of(k * tk, tk)

    # Build this j-slab's support panel once, during the first pass over i:
    #   support[k*tk:(k+1)*tk, :] = X[k_tile, :] @ W[:, j_tile]
    @pl.when(i == 0)
    def _build_support_rows():
        support_ref[pl.ds(k_start, tk), :] = jnp.dot(
            x_ref[...], w_ref[...],
            preferred_element_type=jnp.float32).astype(support_ref.dtype)

    # Zero the accumulator at the start of every reduction.
    @pl.when(k == 0)
    def _init_acc():
        acc_ref[...] = jnp.zeros_like(acc_ref)

    # MXU: (tm, tk) bf16 @ (tk, tn) bf16 into the f32 accumulator.
    acc_ref[...] += jnp.dot(
        adj_ref[...],
        support_ref[pl.ds(k_start, tk), :],
        preferred_element_type=jnp.float32)

    # Epilogue (bias add + cast + store) only on the last reduction step.
    @pl.when(k == n_k - 1)
    def _finalize():
        out_ref[...] = (acc_ref[...] + b_ref[...]).astype(out_ref.dtype)


@functools.partial(jax.jit, static_argnames=("t_row", "t_col", "vmem_limit"))
def _gcn_forward_impl(x, adj, weight, bias, *, t_row, t_col, vmem_limit):
    n, f_in = x.shape
    f_out = weight.shape[1]
    out_dtype = x.dtype

    n_pad = _round_up(n, t_row)
    f_out_pad = _round_up(f_out, t_col)
    f_in_pad = _round_up(f_in, 128)

    # bf16 MXU operands (accumulation stays f32 in-kernel).  Zero padding is
    # exact: padded rows/cols contribute nothing to either matmul.
    x_p = _pad2(x.astype(jnp.bfloat16), n_pad, f_in_pad)
    adj_p = _pad2(adj.astype(jnp.bfloat16), n_pad, n_pad)
    w_p = _pad2(weight.astype(jnp.bfloat16), f_in_pad, f_out_pad)
    if bias is None:
        b_p = jnp.zeros((1, f_out_pad), jnp.float32)
    else:
        b_p = _pad2(bias.reshape(1, f_out).astype(jnp.float32), 1, f_out_pad)

    n_j = f_out_pad // t_col
    n_i = n_pad // t_row
    n_k = n_pad // t_row
    grid = (n_j, n_i, n_k)

    # X is only consumed during the i == 0 support-build pass; pin its block
    # index to a constant for i > 0 so Pallas skips the re-DMA entirely.
    def x_index_map(j, i, k):
        return (jnp.where(i == 0, k, n_k - 1), 0)

    flops = 2 * n_pad * f_in_pad * f_out_pad + 2 * n_pad * n_pad * f_out_pad
    bytes_accessed = (2 * (n_j * x_p.size + n_j * adj_p.size + w_p.size)
                      + 4 * b_p.size
                      + n_pad * f_out_pad * jnp.dtype(out_dtype).itemsize)

    out_p = pl.pallas_call(
        _gcn_fused_kernel,
        out_shape=jax.ShapeDtypeStruct((n_pad, f_out_pad), out_dtype),
        grid_spec=pltpu.PrefetchScalarGridSpec(
            num_scalar_prefetch=0,
            grid=grid,
            in_specs=[
                # X row-tile: fetched only while building the support panel.
                pl.BlockSpec((t_row, f_in_pad), x_index_map),
                # W column slab: block index constant across (i, k) -> resident.
                pl.BlockSpec((f_in_pad, t_col), lambda j, i, k: (0, j)),
                # adj tile (dominant HBM stream, bf16).
                pl.BlockSpec((t_row, t_row), lambda j, i, k: (i, k)),
                # bias slab: constant across (i, k).
                pl.BlockSpec((1, t_col), lambda j, i, k: (0, j)),
            ],
            # Output block index constant across k (reduction last): written once
            # in the finalize branch, lane-dense (t_col multiple of 128).
            out_specs=pl.BlockSpec((t_row, t_col), lambda j, i, k: (i, j)),
            scratch_shapes=[
                pltpu.VMEM((n_pad, t_col), jnp.bfloat16),   # support panel X @ W[:, j]
                pltpu.VMEM((t_row, t_col), jnp.float32),    # f32 output accumulator
            ],
        ),
        compiler_params=pltpu.CompilerParams(
            dimension_semantics=("parallel", "arbitrary", "arbitrary"),
            vmem_limit_bytes=vmem_limit,
        ),
        cost_estimate=pl.CostEstimate(
            flops=flops, transcendentals=0, bytes_accessed=bytes_accessed),
    )(x_p, w_p, adj_p, b_p)

    out = out_p[:n, :f_out]
    if bias is None:
        return out
    # torch: (N, F_out) + (1, 1, F_out) -> (1, N, F_out)
    return out[None, :, :]


def gcn_forward(x, adj, weight, bias=None, *, tm=None, tn=None, tk=None):
    """Fused GCN forward: adj @ (x @ weight) [+ bias].

    x      : (N, F_in)       float32
    adj    : (N, N)          float32
    weight : (F_in, F_out)   float32
    bias   : None or (1, 1, F_out) float32 (torch Parameter shape)

    Returns (N, F_out) if bias is None, else (1, N, F_out), matching the
    PyTorch module's broadcasting behaviour.
    """
    n, _ = x.shape
    f_out = weight.shape[1]

    # --- generation-aware defaults -------------------------------------------
    vmem_cap = _tpu_vmem_bytes()
    # Headroom for Mosaic internal scratch + double-buffered input blocks:
    # ~48 MiB on 64 MiB-per-core parts (v7x), ~96-100 MiB on 128 MiB parts.
    vmem_limit = max(32 << 20, min(vmem_cap * 3 // 4, 100 << 20))
    big_vmem = vmem_cap >= (96 << 20)

    if tm is None:
        tm = 256
    if tk is None:
        tk = 256
    if tn is None:
        tn = 512 if big_vmem else 256   # wider F_out slab halves adj re-streaming

    n_pad, t_row = _pad_and_tile(n, min(tm, tk))
    f_out_pad, t_col = _pad_and_tile(f_out, tn)

    # Megacore: with >=2 TensorCores the only "parallel" grid axis is j (F_out
    # slabs); make sure there are at least 2 of them when F_out allows.
    if _tpu_cores_per_chip() >= 2 and f_out_pad // t_col < 2 and f_out_pad >= 256:
        t_col = f_out_pad // 2 if (f_out_pad // 2) % 128 == 0 else 128

    # Support-panel budget check (bf16 panel = n_pad * t_col * 2 bytes): keep it
    # well under the VMEM limit so double-buffered inputs still fit (v7x-safe).
    if t_col > 128 and n_pad * t_col * 2 > vmem_limit // 3:
        t_col = 128

    return _gcn_forward_impl(x, adj, weight, bias,
                             t_row=t_row, t_col=t_col, vmem_limit=vmem_limit)


def init_graph_convolution_params(key, in_features, out_features, bias=False):
    """Deterministic re-implementation of GraphConvolution.reset_parameters()."""
    stdv = 1.0 / math.sqrt(out_features)
    kw, kb = jax.random.split(key)
    weight = jax.random.uniform(
        kw, (in_features, out_features), jnp.float32, minval=-stdv, maxval=stdv)
    if bias:
        b = jax.random.uniform(
            kb, (1, 1, out_features), jnp.float32, minval=-stdv, maxval=stdv)
    else:
        b = None
    return weight, b


def _ref_bf16(x, adj, w, b):
    """Reference with the same bf16-operand / f32-accumulate rounding as the kernel."""
    sup = jnp.dot(x.astype(jnp.bfloat16), w.astype(jnp.bfloat16),
                  preferred_element_type=jnp.float32).astype(jnp.bfloat16)
    out = jnp.dot(adj.astype(jnp.bfloat16), sup, preferred_element_type=jnp.float32)
    return out if b is None else out + b


def _ref_f32(x, adj, w, b):
    hp = jax.lax.Precision.HIGHEST
    out = jnp.matmul(adj, jnp.matmul(x, w, precision=hp), precision=hp)
    return out if b is None else out + b


if __name__ == "__main__":
    key = jax.random.PRNGKey(0)
    k_x, k_adj, k_params = jax.random.split(key, 3)

    # Small shapes consistent with the module: N=8 nodes, 32 -> 64 features.
    N, F_IN, F_OUT = 8, 32, 64
    x = jax.random.normal(k_x, (N, F_IN), dtype=jnp.float32)
    adj = jax.random.uniform(k_adj, (N, N), dtype=jnp.float32)

    # --- bias=False (PyTorch default) ---
    weight, _ = init_graph_convolution_params(k_params, F_IN, F_OUT, bias=False)
    out = jax.block_until_ready(gcn_forward(x, adj, weight, bias=None))
    assert out.shape == (N, F_OUT)
    assert jnp.allclose(out, _ref_bf16(x, adj, weight, None), atol=2e-2, rtol=1e-2)
    assert jnp.allclose(out, _ref_f32(x, adj, weight, None), atol=2e-1, rtol=3e-2)

    # --- bias=True path (epilogue bias add inside the kernel) ---
    weight_b, bias_b = init_graph_convolution_params(k_params, F_IN, F_OUT, bias=True)
    out_b = jax.block_until_ready(gcn_forward(x, adj, weight_b, bias=bias_b))
    assert out_b.shape == (1, N, F_OUT)
    assert jnp.allclose(out_b, _ref_bf16(x, adj, weight_b, bias_b), atol=2e-2, rtol=1e-2)
    assert jnp.allclose(out_b, _ref_f32(x, adj, weight_b, bias_b), atol=2e-1, rtol=3e-2)

    # --- larger (still small) config exercising the tiled grid:
    #     grid = (3, 2, 2) with 128-tiles -> multi-step j / i / k paths,
    #     support-panel reuse across adj row tiles, k-accumulation, and the
    #     pinned X block index for i > 0. ---
    N2, F_IN2, F_OUT2 = 200, 96, 384
    k2x, k2a, k2p = jax.random.split(jax.random.PRNGKey(1), 3)
    x2 = jax.random.normal(k2x, (N2, F_IN2), dtype=jnp.float32)
    adj2 = jax.random.uniform(k2a, (N2, N2), dtype=jnp.float32)
    w2, b2 = init_graph_convolution_params(k2p, F_IN2, F_OUT2, bias=True)
    out2 = jax.block_until_ready(
        gcn_forward(x2, adj2, w2, bias=b2, tm=128, tn=128, tk=128))
    assert out2.shape == (1, N2, F_OUT2)
    assert jnp.allclose(out2, _ref_bf16(x2, adj2, w2, b2), atol=3e-2, rtol=1e-2)
    assert jnp.allclose(out2, _ref_f32(x2, adj2, w2, b2), atol=3e-1, rtol=3e-2)

    print("KERNEL_OK")
</pallas_src>

<mosaic_0001>
module attributes {stable_mosaic.version = 11 : i64} {
  func.func @_gcn_fused_kernel(%arg0: i32, %arg1: i32, %arg2: i32, %arg3: memref<128x128xbf16, #tpu.memory_space<vmem>>, %arg4: memref<128x128xbf16, #tpu.memory_space<vmem>>, %arg5: memref<128x128xbf16, #tpu.memory_space<vmem>>, %arg6: memref<1x128xf32, #tpu.memory_space<vmem>>, %arg7: memref<128x128xf32, #tpu.memory_space<vmem>>, %arg8: memref<128x128xbf16, #tpu.memory_space<vmem>>, %arg9: memref<128x128xf32, #tpu.memory_space<vmem>>) attributes {dimension_semantics = [#tpu.dimension_semantics<parallel>, #tpu.dimension_semantics<arbitrary>, #tpu.dimension_semantics<arbitrary>], iteration_bounds = array<i64: 1, 1, 1>, scalar_prefetch = 0 : i64, scratch_operands = 2 : i64, tpu.core_type = #tpu.core_type<tc>, window_params = [{transform_indices = @transform_0, window_bounds = array<i64: 128, 128>}, {transform_indices = @transform_1, window_bounds = array<i64: 128, 128>}, {transform_indices = @transform_2, window_bounds = array<i64: 128, 128>}, {transform_indices = @transform_3, window_bounds = array<i64: 1, 128>}, {transform_indices = @transform_4, window_bounds = array<i64: 128, 128>}]} {
    %c128_i32 = arith.constant 128 : i32
    %0 = arith.muli %arg2, %c128_i32 : i32
    %1 = tpu.assume_multiple %0, 128 : i32
    %c0_i32 = arith.constant 0 : i32
    %2 = arith.cmpi eq, %arg1, %c0_i32 : i32
    %3 = arith.extui %2 : i1 to i32
    %c0_i32_0 = arith.constant 0 : i32
    %4 = arith.cmpi ne, %3, %c0_i32_0 : i32
    scf.if %4 {
      %c0_11 = arith.constant 0 : index
      %c0_12 = arith.constant 0 : index
      %18 = vector.load %arg3[%c0_11, %c0_12] : memref<128x128xbf16, #tpu.memory_space<vmem>>, vector<128x128xbf16>
      %c0_13 = arith.constant 0 : index
      %c0_14 = arith.constant 0 : index
      %19 = vector.load %arg4[%c0_13, %c0_14] : memref<128x128xbf16, #tpu.memory_space<vmem>>, vector<128x128xbf16>
      %cst_15 = arith.constant dense<0.000000e+00> : vector<128x128xf32>
      %20 = tpu.matmul %18, %19, %cst_15 {dimension_numbers = #tpu.dot_dimension_numbers<[1], [0], [0], [1], [0, 0, 1, 1], [], []>} : vector<128x128xbf16>, vector<128x128xbf16>, vector<128x128xf32> -> vector<128x128xf32>
      %21 = arith.truncf %20 : vector<128x128xf32> to vector<128x128xbf16>
      %22 = arith.index_cast %1 : i32 to index
      %c0_16 = arith.constant 0 : index
      %23 = vector.load %arg8[%22, %c0_16] : memref<128x128xbf16, #tpu.memory_space<vmem>>, vector<128x128xbf16>
      tpu.vector_store %arg8[%22, %c0_16], %21 {strides = array<i32>} : memref<128x128xbf16, #tpu.memory_space<vmem>>, vector<128x128xbf16>,
    } else {
    }
    %c0_i32_1 = arith.constant 0 : i32
    %5 = arith.cmpi eq, %arg2, %c0_i32_1 : i32
    %6 = arith.extui %5 : i1 to i32
    %c0_i32_2 = arith.constant 0 : i32
    %7 = arith.cmpi ne, %6, %c0_i32_2 : i32
    scf.if %7 {
      %cst_11 = arith.constant 0.000000e+00 : f32
      %18 = vector.broadcast %cst_11 : f32 to vector<128x128xf32>
      %c0_12 = arith.constant 0 : index
      %c0_13 = arith.constant 0 : index
      %19 = vector.load %arg9[%c0_12, %c0_13] : memref<128x128xf32, #tpu.memory_space<vmem>>, vector<128x128xf32>
      tpu.vector_store %arg9[%c0_12, %c0_13], %18 {strides = array<i32>} : memref<128x128xf32, #tpu.memory_space<vmem>>, vector<128x128xf32>,
    } else {
    }
    %c0 = arith.constant 0 : index
    %c0_3 = arith.constant 0 : index
    %8 = vector.load %arg9[%c0, %c0_3] : memref<128x128xf32, #tpu.memory_space<vmem>>, vector<128x128xf32>
    %c0_4 = arith.constant 0 : index
    %c0_5 = arith.constant 0 : index
    %9 = vector.load %arg5[%c0_4, %c0_5] : memref<128x128xbf16, #tpu.memory_space<vmem>>, vector<128x128xbf16>
    %10 = arith.index_cast %1 : i32 to index
    %c0_6 = arith.constant 0 : index
    %11 = vector.load %arg8[%10, %c0_6] : memref<128x128xbf16, #tpu.memory_space<vmem>>, vector<128x128xbf16>
    %cst = arith.constant dense<0.000000e+00> : vector<128x128xf32>
    %12 = tpu.matmul %9, %11, %cst {dimension_numbers = #tpu.dot_dimension_numbers<[1], [0], [0], [1], [0, 0, 1, 1], [], []>} : vector<128x128xbf16>, vector<128x128xbf16>, vector<128x128xf32> -> vector<128x128xf32>
    %13 = arith.addf %8, %12 : vector<128x128xf32>
    %c0_7 = arith.constant 0 : index
    %c0_8 = arith.constant 0 : index
    %14 = vector.load %arg9[%c0_7, %c0_8] : memref<128x128xf32, #tpu.memory_space<vmem>>, vector<128x128xf32>
    tpu.vector_store %arg9[%c0_7, %c0_8], %13 {strides = array<i32>} : memref<128x128xf32, #tpu.memory_space<vmem>>, vector<128x128xf32>,
    %c0_i32_9 = arith.constant 0 : i32
    %15 = arith.cmpi eq, %arg2, %c0_i32_9 : i32
    %16 = arith.extui %15 : i1 to i32
    %c0_i32_10 = arith.constant 0 : i32
    %17 = arith.cmpi ne, %16, %c0_i32_10 : i32
    scf.if %17 {
      %c0_11 = arith.constant 0 : index
      %c0_12 = arith.constant 0 : index
      %18 = vector.load %arg9[%c0_11, %c0_12] : memref<128x128xf32, #tpu.memory_space<vmem>>, vector<128x128xf32>
      %c0_13 = arith.constant 0 : index
      %c0_14 = arith.constant 0 : index
      %19 = vector.load %arg6[%c0_13, %c0_14] : memref<1x128xf32, #tpu.memory_space<vmem>>, vector<1x128xf32>
      %20 = vector.broadcast %19 : vector<1x128xf32> to vector<128x128xf32>
      %21 = arith.addf %18, %20 : vector<128x128xf32>
      %c0_15 = arith.constant 0 : index
      %c0_16 = arith.constant 0 : index
      %22 = vector.load %arg7[%c0_15, %c0_16] : memref<128x128xf32, #tpu.memory_space<vmem>>, vector<128x128xf32>
      tpu.vector_store %arg7[%c0_15, %c0_16], %21 {strides = array<i32>} : memref<128x128xf32, #tpu.memory_space<vmem>>, vector<128x128xf32>,
    } else {
    }
    return
  }
  func.func @transform_0(%arg0: i32, %arg1: i32, %arg2: i32) -> (i32, i32) {
    %c0_i32 = arith.constant 0 : i32
    %0 = arith.cmpi eq, %arg1, %c0_i32 : i32
    %c0_i32_0 = arith.constant 0 : i32
    %1 = arith.select %0, %arg2, %c0_i32_0 : i32
    %c0_i32_1 = arith.constant 0 : i32
    %c0_i32_2 = arith.constant 0 : i32
    return %1, %c0_i32_1 : i32, i32
  }
  func.func @transform_1(%arg0: i32, %arg1: i32, %arg2: i32) -> (i32, i32) {
    %c0_i32 = arith.constant 0 : i32
    %c0_i32_0 = arith.constant 0 : i32
    return %c0_i32, %arg0 : i32, i32
  }
  func.func @transform_2(%arg0: i32, %arg1: i32, %arg2: i32) -> (i32, i32) {
    %c0_i32 = arith.constant 0 : i32
    return %arg1, %arg2 : i32, i32
  }
  func.func @transform_3(%arg0: i32, %arg1: i32, %arg2: i32) -> (i32, i32) {
    %c0_i32 = arith.constant 0 : i32
    %c0_i32_0 = arith.constant 0 : i32
    return %c0_i32, %arg0 : i32, i32
  }
  func.func @transform_4(%arg0: i32, %arg1: i32, %arg2: i32) -> (i32, i32) {
    %c0_i32 = arith.constant 0 : i32
    return %arg1, %arg0 : i32, i32
  }
}

</mosaic_0001>

<llo_original>
// kernel: _gcn_forward_impl.1
$region0: #{_gcn_forward_impl.1}
  #allocation0 [shape = 'u32[]', space=smem, size = 0x4, offset = 0x4, fixed_abs, tag = 'smem constant byte address 0x4 - core index']
  #allocation1 [shape = 'u32[144,128]{1,0:T(1,128)}', space=vmem, size = 0x12000, scoped, tag = 'internal scratch']
  #allocation2 [shape = 'bf16[128,128]{1,0:T(8,128)(2,1)}', space=vmem, size = 0x8000, scoped, tag = 'scratch operand']
  #allocation3 [shape = 'f32[128,128]{1,0:T(8,128)}', space=vmem, size = 0x10000, scoped, tag = 'scratch operand']
  %s0 = inlined_call_operand.vmem [shape: bf16[128,128], index: 0, kind: input, shape index: {}]
  %s1 = inlined_call_operand.vmem [shape: bf16[128,128], index: 1, kind: input, shape index: {}]
  %s2 = inlined_call_operand.vmem [shape: bf16[128,128], index: 2, kind: input, shape index: {}]
  %s3 = inlined_call_operand.vmem [shape: f32[1,128], index: 3, kind: input, shape index: {}]
  %s4 = inlined_call_operand.vmem [shape: f32[128,128], index: 4, kind: output, shape index: {}]
  %s5 = sld [smem:[#allocation0]]
  $region38: #{_gcn_forward_impl.1} parent=0
    _
  %s7 = ssub.s32 1, %s5
  %s8 = scalar_select 0, %s7, %s5
  // Predicated region
  $region2: #{_gcn_forward_impl.1} parent=0 // pred_check
    _
  $region3: #{_gcn_forward_impl.1} parent=0 // pred_check_branch
    %10 = sbr.rel (0) target = $region5
  $region4: #{_gcn_forward_impl.1} parent=0 // pred_region
    %p11 = scmp.eq.s32.totalorder 0, 0
    %s12 = scalar_select %p11, 0, 0
    %s13 = smul.u32 16, %s12
    %p14 = scmp.lt.s32.totalorder %s13, 15
    %s15 = scalar_select %p14, %s13, 15
    %s16 = smul.addr %s15, 4
    %s17 = scalar_lea.vmem %s0, %s16
    %p18 = scmp.eq.s32.totalorder 0, 0
    %s19 = scalar_select %p18, 0, 0
    %s20 = smul.u32 16, %s19
  $region5: #{_gcn_forward_impl.1} parent=0 // pred_fallthru
    _
  // Predicated region
  $region6: #{_gcn_forward_impl.1} parent=0 // pred_check
    _
  $region7: #{_gcn_forward_impl.1} parent=0 // pred_check_branch
    %22 = sbr.rel (0) target = $region9
  $region8: #{_gcn_forward_impl.1} parent=0 // pred_region
    _
  $region9: #{_gcn_forward_impl.1} parent=0 // pred_fallthru
    _
  // Predicated region
  $region10: #{_gcn_forward_impl.1} parent=0 // pred_check
    _
  $region11: #{_gcn_forward_impl.1} parent=0 // pred_check_branch
    %24 = sbr.rel (0) target = $region13
  $region12: #{_gcn_forward_impl.1} parent=0 // pred_region
    _
  $region13: #{_gcn_forward_impl.1} parent=0 // pred_fallthru
    _
  // Predicated region
  $region14: #{_gcn_forward_impl.1} parent=0 // pred_check
    _
  $region15: #{_gcn_forward_impl.1} parent=0 // pred_check_branch
    %26 = sbr.rel (0) target = $region17
  $region16: #{_gcn_forward_impl.1} parent=0 // pred_region
    _
  $region17: #{_gcn_forward_impl.1} parent=0 // pred_fallthru
    _
  %p27 = scmp.eq.s32.totalorder 0, 0
  %s28 = scalar_select %p27, 0, 0
  %s29 = smul.u32 16, %s28
  %p30 = scmp.lt.s32.totalorder %s29, 15
  %s31 = scalar_select %p30, %s29, 15
  %s32 = smul.addr %s31, 4
  %s33 = scalar_lea.vmem %s0, %s32
  %p34 = scmp.eq.s32.totalorder 0, 0
  %s35 = scalar_select %p34, 0, 0
  %s36 = smul.u32 16, %s35
  %p37 = scmp.lt.s32.totalorder %s36, 15
  %s38 = scalar_select %p37, %s36, 15
  %s39 = smul.addr %s38, 4
  %s40 = scalar_lea.vmem %s0, %s39
  %p41 = scmp.eq.s32.totalorder 0, 0
  %s42 = scalar_select %p41, 0, 0
  %s43 = smul.u32 16, %s42
  %s45 = smul.u32 0, 128
  %p46 = scmp.eq.s32.totalorder 0, 0
  // Predicated region
  $region18: #{_gcn_forward_impl.1} parent=0 // pred_check
    %p47 = pneg %p46
  $region19: #{_gcn_forward_impl.1} parent=0 // pred_check_branch
    %49 = sbr.rel (%p47) target = $region21
  $region20: #{_gcn_forward_impl.1} parent=0 // pred_region
    %v50 = vld [vmem:[%s40] sm:$0xf]
    %v51 = vld [vmem:[%s40 + $0x4] sm:$0xf]
    %v52 = vld [vmem:[%s40 + $0x8] sm:$0xf]
    %v53 = vld [vmem:[%s40 + $0xc] sm:$0xf]
    %v54 = vld [vmem:[%s40 + $0x10] sm:$0xf]
    %v55 = vld [vmem:[%s40 + $0x14] sm:$0xf]
    %v56 = vld [vmem:[%s40 + $0x18] sm:$0xf]
    %v57 = vld [vmem:[%s40 + $0x1c] sm:$0xf]
    %v58 = vld [vmem:[%s40 + $0x20] sm:$0xf]
    %v59 = vld [vmem:[%s40 + $0x24] sm:$0xf]
    %v60 = vld [vmem:[%s40 + $0x28] sm:$0xf]
    %v61 = vld [vmem:[%s40 + $0x2c] sm:$0xf]
    %v62 = vld [vmem:[%s40 + $0x30] sm:$0xf]
    %v63 = vld [vmem:[%s40 + $0x34] sm:$0xf]
    %v64 = vld [vmem:[%s40 + $0x38] sm:$0xf]
    %v65 = vld [vmem:[%s40 + $0x3c] sm:$0xf]
    %v66 = vld [vmem:[%s1] sm:$0xf]
    %v67 = vld [vmem:[%s1 + $0x4] sm:$0xf]
    %v68 = vld [vmem:[%s1 + $0x8] sm:$0xf]
    %v69 = vld [vmem:[%s1 + $0xc] sm:$0xf]
    %v70 = vld [vmem:[%s1 + $0x10] sm:$0xf]
    %v71 = vld [vmem:[%s1 + $0x14] sm:$0xf]
    %v72 = vld [vmem:[%s1 + $0x18] sm:$0xf]
    %v73 = vld [vmem:[%s1 + $0x1c] sm:$0xf]
    %v74 = vld [vmem:[%s1 + $0x20] sm:$0xf]
    %v75 = vld [vmem:[%s1 + $0x24] sm:$0xf]
    %v76 = vld [vmem:[%s1 + $0x28] sm:$0xf]
    %v77 = vld [vmem:[%s1 + $0x2c] sm:$0xf]
    %v78 = vld [vmem:[%s1 + $0x30] sm:$0xf]
    %v79 = vld [vmem:[%s1 + $0x34] sm:$0xf]
    %v80 = vld [vmem:[%s1 + $0x38] sm:$0xf]
    %v81 = vld [vmem:[%s1 + $0x3c] sm:$0xf]
    %v98 = vunpack.c.l.b16 %v50
    %v99 = vunpack.c.l.b16 %v51
    %v100 = vunpack.c.l.b16 %v52
    %v101 = vunpack.c.l.b16 %v53
    %v102 = vunpack.c.l.b16 %v54
    %v103 = vunpack.c.l.b16 %v55
    %v104 = vunpack.c.l.b16 %v56
    %v105 = vunpack.c.l.b16 %v57
    %v106 = vunpack.c.l.b16 %v58
    %v107 = vunpack.c.l.b16 %v59
    %v108 = vunpack.c.l.b16 %v60
    %v109 = vunpack.c.l.b16 %v61
    %v110 = vunpack.c.l.b16 %v62
    %v111 = vunpack.c.l.b16 %v63
    %v112 = vunpack.c.l.b16 %v64
    %v113 = vunpack.c.l.b16 %v65
    %v114 = vpack.c.b16 %v99, %v98
    %v115 = vpack.c.b16 %v101, %v100
    %v116 = vpack.c.b16 %v103, %v102
    %v117 = vpack.c.b16 %v105, %v104
    %v118 = vpack.c.b16 %v107, %v106
    %v119 = vpack.c.b16 %v109, %v108
    %v120 = vpack.c.b16 %v111, %v110
    %v121 = vpack.c.b16 %v113, %v112
    %v146 = vunpack.c.l.b16 %v66
    %v147 = vunpack.c.l.b16 %v67
    %v148 = vunpack.c.l.b16 %v68
    %v149 = vunpack.c.l.b16 %v69
    %v150 = vunpack.c.l.b16 %v70
    %v151 = vunpack.c.l.b16 %v71
    %v152 = vunpack.c.l.b16 %v72
    %v153 = vunpack.c.l.b16 %v73
    %v154 = vunpack.c.l.b16 %v74
    %v155 = vunpack.c.l.b16 %v75
    %v156 = vunpack.c.l.b16 %v76
    %v157 = vunpack.c.l.b16 %v77
    %v158 = vunpack.c.l.b16 %v78
    %v159 = vunpack.c.l.b16 %v79
    %v160 = vunpack.c.l.b16 %v80
    %v161 = vunpack.c.l.b16 %v81
    %v162 = vpack.c.b16 %v147, %v146
    %v163 = vpack.c.b16 %v149, %v148
    %v164 = vpack.c.b16 %v151, %v150
    %v165 = vpack.c.b16 %v153, %v152
    %v166 = vpack.c.b16 %v155, %v154
    %v167 = vpack.c.b16 %v157, %v156
    %v168 = vpack.c.b16 %v159, %v158
    %v169 = vpack.c.b16 %v161, %v160
    %178 = vmatprep.subr.bf16.mxu0 0
    %179 = vmatpush1.bf16.msra.mxu0 %v169
    %180 = vmatprep.subr.bf16.mxu0 0
    %181 = vmatpush1.bf16.msra.mxu0 %v168
    %182 = vmatprep.subr.bf16.mxu0 0
    %183 = vmatpush1.bf16.msra.mxu0 %v167
    %184 = vmatprep.subr.bf16.mxu0 0
    %185 = vmatpush1.bf16.msra.mxu0 %v166
    %186 = vmatprep.subr.bf16.mxu0 0
    %187 = vmatpush1.bf16.msra.mxu0 %v165
    %188 = vmatprep.subr.bf16.mxu0 0
    %189 = vmatpush1.bf16.msra.mxu0 %v164
    %190 = vmatprep.subr.bf16.mxu0 0
    %191 = vmatpush1.bf16.msra.mxu0 %v163
    %192 = vmatprep.subr.bf16.mxu0 0
    %193 = vmatpush1.bf16.msra.mxu0 %v162
    %194 = vmatprep.subr.bf16.mxu0 0
    %195 = vmatpush2.bf16.msra.mxu0 0
    %196 = vmatprep.subr.bf16.mxu0 0
    %197 = vmatpush2.bf16.msra.mxu0 0
    %198 = vmatprep.subr.bf16.mxu0 0
    %199 = vmatpush2.bf16.msra.mxu0 0
    %200 = vmatprep.subr.bf16.mxu0 0
    %201 = vmatpush2.bf16.msra.mxu0 0
    %202 = vmatprep.subr.bf16.mxu0 0
    %203 = vmatpush2.bf16.msra.mxu0 0
    %204 = vmatprep.subr.bf16.mxu0 0
    %205 = vmatpush2.bf16.msra.mxu0 0
    %206 = vmatprep.subr.bf16.mxu0 0
    %207 = vmatpush2.bf16.msra.mxu0 0
    %208 = vmatprep.subr.bf16.mxu0 0
    %209 = vmatpush2.bf16.msra.mxu0 0
    %210 = vmatprep.mubr.bf16.mxu0 0
    %211 = vmatmul.mubr.bf16.gmra.mxu0 %v114
    %v212 = vpop.f32.mrf.mxu0
    %v213 = vadd.f32 0.0, %v212
    %v214 = vpop.f32.mrf.mxu0
    %v215 = vpop.f32.mrf.mxu0
    %v216 = vadd.f32 0.0, %v215
    %v217 = vpop.f32.mrf.mxu0
    %218 = vmatprep.mubr.bf16.mxu0 0
    %219 = vmatmul.mubr.bf16.gmra.mxu0 %v115
    %v220 = vpop.f32.mrf.mxu0
    %v221 = vadd.f32 0.0, %v220
    %v222 = vpop.f32.mrf.mxu0
    %v223 = vpop.f32.mrf.mxu0
    %v224 = vadd.f32 0.0, %v223
    %v225 = vpop.f32.mrf.mxu0
    %226 = vmatprep.mubr.bf16.mxu0 0
    %227 = vmatmul.mubr.bf16.gmra.mxu0 %v116
    %v228 = vpop.f32.mrf.mxu0
    %v229 = vadd.f32 0.0, %v228
    %v230 = vpop.f32.mrf.mxu0
    %v231 = vpop.f32.mrf.mxu0
    %v232 = vadd.f32 0.0, %v231
    %v233 = vpop.f32.mrf.mxu0
    %234 = vmatprep.mubr.bf16.mxu0 0
    %235 = vmatmul.mubr.bf16.gmra.mxu0 %v117
    %v236 = vpop.f32.mrf.mxu0
    %v237 = vadd.f32 0.0, %v236
    %v238 = vpop.f32.mrf.mxu0
    %v239 = vpop.f32.mrf.mxu0
    %v240 = vadd.f32 0.0, %v239
    %v241 = vpop.f32.mrf.mxu0
    %242 = vmatprep.mubr.bf16.mxu0 0
    %243 = vmatmul.mubr.bf16.gmra.mxu0 %v118
    %v244 = vpop.f32.mrf.mxu0
    %v245 = vadd.f32 0.0, %v244
    %v246 = vpop.f32.mrf.mxu0
    %v247 = vpop.f32.mrf.mxu0
    %v248 = vadd.f32 0.0, %v247
    %v249 = vpop.f32.mrf.mxu0
    %250 = vmatprep.mubr.bf16.mxu0 0
    %251 = vmatmul.mubr.bf16.gmra.mxu0 %v119
    %v252 = vpop.f32.mrf.mxu0
    %v253 = vadd.f32 0.0, %v252
    %v254 = vpop.f32.mrf.mxu0
    %v255 = vpop.f32.mrf.mxu0
    %v256 = vadd.f32 0.0, %v255
    %v257 = vpop.f32.mrf.mxu0
    %258 = vmatprep.mubr.bf16.mxu0 0
    %259 = vmatmul.mubr.bf16.gmra.mxu0 %v120
    %v260 = vpop.f32.mrf.mxu0
    %v261 = vadd.f32 0.0, %v260
    %v262 = vpop.f32.mrf.mxu0
    %v263 = vpop.f32.mrf.mxu0
    %v264 = vadd.f32 0.0, %v263
    %v265 = vpop.f32.mrf.mxu0
    %266 = vmatprep.mubr.bf16.mxu0 0
    %267 = vmatmul.mubr.bf16.gmra.mxu0 %v121
    %v268 = vpop.f32.mrf.mxu0
    %v269 = vadd.f32 0.0, %v268
    %v270 = vpop.f32.mrf.mxu0
    %v271 = vpop.f32.mrf.mxu0
    %v272 = vadd.f32 0.0, %v271
    %v273 = vpop.f32.mrf.mxu0
    %274 = vdwg.mxu0
    %v275 = vpack.c.bf16 %v216, %v213
    %v276 = vpack.c.bf16 %v224, %v221
    %v277 = vpack.c.bf16 %v232, %v229
    %v278 = vpack.c.bf16 %v240, %v237
    %v279 = vpack.c.bf16 %v248, %v245
    %v280 = vpack.c.bf16 %v256, %v253
    %v281 = vpack.c.bf16 %v264, %v261
    %v282 = vpack.c.bf16 %v272, %v269
    %v291 = vunpack.c.l.b16 %v275
    %v292 = vunpack.c.h.b16 %v275
    %v293 = vunpack.c.l.b16 %v276
    %v294 = vunpack.c.h.b16 %v276
    %v295 = vunpack.c.l.b16 %v277
    %v296 = vunpack.c.h.b16 %v277
    %v297 = vunpack.c.l.b16 %v278
    %v298 = vunpack.c.h.b16 %v278
    %v299 = vunpack.c.l.b16 %v279
    %v300 = vunpack.c.h.b16 %v279
    %v301 = vunpack.c.l.b16 %v280
    %v302 = vunpack.c.h.b16 %v280
    %v303 = vunpack.c.l.b16 %v281
    %v304 = vunpack.c.h.b16 %v281
    %v305 = vunpack.c.l.b16 %v282
    %v306 = vunpack.c.h.b16 %v282
    %v307 = vpack.c.b16 %v291, %v291
    %v308 = vpack.c.b16 %v292, %v292
    %v309 = vpack.c.b16 %v293, %v293
    %v310 = vpack.c.b16 %v294, %v294
    %v311 = vpack.c.b16 %v295, %v295
    %v312 = vpack.c.b16 %v296, %v296
    %v313 = vpack.c.b16 %v297, %v297
    %v314 = vpack.c.b16 %v298, %v298
    %v315 = vpack.c.b16 %v299, %v299
    %v316 = vpack.c.b16 %v300, %v300
    %v317 = vpack.c.b16 %v301, %v301
    %v318 = vpack.c.b16 %v302, %v302
    %v319 = vpack.c.b16 %v303, %v303
    %v320 = vpack.c.b16 %v304, %v304
    %v321 = vpack.c.b16 %v305, %v305
    %v322 = vpack.c.b16 %v306, %v306
    %s339 = sshra.s32 %s45, 3
    %s340 = sand.u32 %s45, 7
    %s341 = smul.addr %s339, 4
    %s342 = scalar_lea.vmem [#allocation2], %s341
    %343 = vst [vmem:[%s342] sm:$0xf] %v307
    %344 = vst [vmem:[%s342 + $0x4] sm:$0xf] %v308
    %345 = vst [vmem:[%s342 + $0x8] sm:$0xf] %v309
    %346 = vst [vmem:[%s342 + $0xc] sm:$0xf] %v310
    %347 = vst [vmem:[%s342 + $0x10] sm:$0xf] %v311
    %348 = vst [vmem:[%s342 + $0x14] sm:$0xf] %v312
    %349 = vst [vmem:[%s342 + $0x18] sm:$0xf] %v313
    %350 = vst [vmem:[%s342 + $0x1c] sm:$0xf] %v314
    %351 = vst [vmem:[%s342 + $0x20] sm:$0xf] %v315
    %352 = vst [vmem:[%s342 + $0x24] sm:$0xf] %v316
    %353 = vst [vmem:[%s342 + $0x28] sm:$0xf] %v317
    %354 = vst [vmem:[%s342 + $0x2c] sm:$0xf] %v318
    %355 = vst [vmem:[%s342 + $0x30] sm:$0xf] %v319
    %356 = vst [vmem:[%s342 + $0x34] sm:$0xf] %v320
    %357 = vst [vmem:[%s342 + $0x38] sm:$0xf] %v321
    %358 = vst [vmem:[%s342 + $0x3c] sm:$0xf] %v322
  $region21: #{_gcn_forward_impl.1} parent=0 // pred_fallthru
    _
  %p359 = scmp.eq.s32.totalorder 0, 0
  // Predicated region
  $region22: #{_gcn_forward_impl.1} parent=0 // pred_check
    %p360 = pneg %p359
  $region23: #{_gcn_forward_impl.1} parent=0 // pred_check_branch
    %362 = sbr.rel (%p360) target = $region25
  $region24: #{_gcn_forward_impl.1} parent=0 // pred_region
    %363 = vst [vmem:[#allocation3] sm:$0xff] 0.0
    %364 = vst [vmem:[#allocation3 + $0x8] sm:$0xff] 0.0
    %365 = vst [vmem:[#allocation3 + $0x10] sm:$0xff] 0.0
    %366 = vst [vmem:[#allocation3 + $0x18] sm:$0xff] 0.0
    %367 = vst [vmem:[#allocation3 + $0x20] sm:$0xff] 0.0
    %368 = vst [vmem:[#allocation3 + $0x28] sm:$0xff] 0.0
    %369 = vst [vmem:[#allocation3 + $0x30] sm:$0xff] 0.0
    %370 = vst [vmem:[#allocation3 + $0x38] sm:$0xff] 0.0
    %371 = vst [vmem:[#allocation3 + $0x40] sm:$0xff] 0.0
    %372 = vst [vmem:[#allocation3 + $0x48] sm:$0xff] 0.0
    %373 = vst [vmem:[#allocation3 + $0x50] sm:$0xff] 0.0
    %374 = vst [vmem:[#allocation3 + $0x58] sm:$0xff] 0.0
    %375 = vst [vmem:[#allocation3 + $0x60] sm:$0xff] 0.0
    %376 = vst [vmem:[#allocation3 + $0x68] sm:$0xff] 0.0
    %377 = vst [vmem:[#allocation3 + $0x70] sm:$0xff] 0.0
    %378 = vst [vmem:[#allocation3 + $0x78] sm:$0xff] 0.0
  $region25: #{_gcn_forward_impl.1} parent=0 // pred_fallthru
    _
  %v379 = vld [vmem:[#allocation3] sm:$0xff]
  %v380 = vld [vmem:[#allocation3 + $0x8] sm:$0xff]
  %v381 = vld [vmem:[#allocation3 + $0x10] sm:$0xff]
  %v382 = vld [vmem:[#allocation3 + $0x18] sm:$0xff]
  %v383 = vld [vmem:[#allocation3 + $0x20] sm:$0xff]
  %v384 = vld [vmem:[#allocation3 + $0x28] sm:$0xff]
  %v385 = vld [vmem:[#allocation3 + $0x30] sm:$0xff]
  %v386 = vld [vmem:[#allocation3 + $0x38] sm:$0xff]
  %v387 = vld [vmem:[#allocation3 + $0x40] sm:$0xff]
  %v388 = vld [vmem:[#allocation3 + $0x48] sm:$0xff]
  %v389 = vld [vmem:[#allocation3 + $0x50] sm:$0xff]
  %v390 = vld [vmem:[#allocation3 + $0x58] sm:$0xff]
  %v391 = vld [vmem:[#allocation3 + $0x60] sm:$0xff]
  %v392 = vld [vmem:[#allocation3 + $0x68] sm:$0xff]
  %v393 = vld [vmem:[#allocation3 + $0x70] sm:$0xff]
  %v394 = vld [vmem:[#allocation3 + $0x78] sm:$0xff]
  %v395 = vld [vmem:[%s2] sm:$0xf]
  %v396 = vld [vmem:[%s2 + $0x4] sm:$0xf]
  %v397 = vld [vmem:[%s2 + $0x8] sm:$0xf]
  %v398 = vld [vmem:[%s2 + $0xc] sm:$0xf]
  %v399 = vld [vmem:[%s2 + $0x10] sm:$0xf]
  %v400 = vld [vmem:[%s2 + $0x14] sm:$0xf]
  %v401 = vld [vmem:[%s2 + $0x18] sm:$0xf]
  %v402 = vld [vmem:[%s2 + $0x1c] sm:$0xf]
  %v403 = vld [vmem:[%s2 + $0x20] sm:$0xf]
  %v404 = vld [vmem:[%s2 + $0x24] sm:$0xf]
  %v405 = vld [vmem:[%s2 + $0x28] sm:$0xf]
  %v406 = vld [vmem:[%s2 + $0x2c] sm:$0xf]
  %v407 = vld [vmem:[%s2 + $0x30] sm:$0xf]
  %v408 = vld [vmem:[%s2 + $0x34] sm:$0xf]
  %v409 = vld [vmem:[%s2 + $0x38] sm:$0xf]
  %v410 = vld [vmem:[%s2 + $0x3c] sm:$0xf]
  %s411 = sshra.s32 %s45, 3
  %s412 = sand.u32 %s45, 7
  %s413 = smul.addr %s411, 4
  %s414 = scalar_lea.vmem [#allocation2], %s413
  %v415 = vld [vmem:[%s414] sm:$0xf]
  %v416 = vld [vmem:[%s414 + $0x4] sm:$0xf]
  %v417 = vld [vmem:[%s414 + $0x8] sm:$0xf]
  %v418 = vld [vmem:[%s414 + $0xc] sm:$0xf]
  %v419 = vld [vmem:[%s414 + $0x10] sm:$0xf]
  %v420 = vld [vmem:[%s414 + $0x14] sm:$0xf]
  %v421 = vld [vmem:[%s414 + $0x18] sm:$0xf]
  %v422 = vld [vmem:[%s414 + $0x1c] sm:$0xf]
  %v423 = vld [vmem:[%s414 + $0x20] sm:$0xf]
  %v424 = vld [vmem:[%s414 + $0x24] sm:$0xf]
  %v425 = vld [vmem:[%s414 + $0x28] sm:$0xf]
  %v426 = vld [vmem:[%s414 + $0x2c] sm:$0xf]
  %v427 = vld [vmem:[%s414 + $0x30] sm:$0xf]
  %v428 = vld [vmem:[%s414 + $0x34] sm:$0xf]
  %v429 = vld [vmem:[%s414 + $0x38] sm:$0xf]
  %v430 = vld [vmem:[%s414 + $0x3c] sm:$0xf]
  %v447 = vunpack.c.l.b16 %v395
  %v448 = vunpack.c.l.b16 %v396
  %v449 = vunpack.c.l.b16 %v397
  %v450 = vunpack.c.l.b16 %v398
  %v451 = vunpack.c.l.b16 %v399
  %v452 = vunpack.c.l.b16 %v400
  %v453 = vunpack.c.l.b16 %v401
  %v454 = vunpack.c.l.b16 %v402
  %v455 = vunpack.c.l.b16 %v403
  %v456 = vunpack.c.l.b16 %v404
  %v457 = vunpack.c.l.b16 %v405
  %v458 = vunpack.c.l.b16 %v406
  %v459 = vunpack.c.l.b16 %v407
  %v460 = vunpack.c.l.b16 %v408
  %v461 = vunpack.c.l.b16 %v409
  %v462 = vunpack.c.l.b16 %v410
  %v463 = vpack.c.b16 %v448, %v447
  %v464 = vpack.c.b16 %v450, %v449
  %v465 = vpack.c.b16 %v452, %v451
  %v466 = vpack.c.b16 %v454, %v453
  %v467 = vpack.c.b16 %v456, %v455
  %v468 = vpack.c.b16 %v458, %v457
  %v469 = vpack.c.b16 %v460, %v459
  %v470 = vpack.c.b16 %v462, %v461
  %v495 = vunpack.c.l.b16 %v415
  %v496 = vunpack.c.l.b16 %v416
  %v497 = vunpack.c.l.b16 %v417
  %v498 = vunpack.c.l.b16 %v418
  %v499 = vunpack.c.l.b16 %v419
  %v500 = vunpack.c.l.b16 %v420
  %v501 = vunpack.c.l.b16 %v421
  %v502 = vunpack.c.l.b16 %v422
  %v503 = vunpack.c.l.b16 %v423
  %v504 = vunpack.c.l.b16 %v424
  %v505 = vunpack.c.l.b16 %v425
  %v506 = vunpack.c.l.b16 %v426
  %v507 = vunpack.c.l.b16 %v427
  %v508 = vunpack.c.l.b16 %v428
  %v509 = vunpack.c.l.b16 %v429
  %v510 = vunpack.c.l.b16 %v430
  %v511 = vpack.c.b16 %v496, %v495
  %v512 = vpack.c.b16 %v498, %v497
  %v513 = vpack.c.b16 %v500, %v499
  %v514 = vpack.c.b16 %v502, %v501
  %v515 = vpack.c.b16 %v504, %v503
  %v516 = vpack.c.b16 %v506, %v505
  %v517 = vpack.c.b16 %v508, %v507
  %v518 = vpack.c.b16 %v510, %v509
  %527 = vmatprep.subr.bf16.mxu0 0
  %528 = vmatpush1.bf16.msra.mxu0 %v518
  %529 = vmatprep.subr.bf16.mxu0 0
  %530 = vmatpush1.bf16.msra.mxu0 %v517
  %531 = vmatprep.subr.bf16.mxu0 0
  %532 = vmatpush1.bf16.msra.mxu0 %v516
  %533 = vmatprep.subr.bf16.mxu0 0
  %534 = vmatpush1.bf16.msra.mxu0 %v515
  %535 = vmatprep.subr.bf16.mxu0 0
  %536 = vmatpush1.bf16.msra.mxu0 %v514
  %537 = vmatprep.subr.bf16.mxu0 0
  %538 = vmatpush1.bf16.msra.mxu0 %v513
  %539 = vmatprep.subr.bf16.mxu0 0
  %540 = vmatpush1.bf16.msra.mxu0 %v512
  %541 = vmatprep.subr.bf16.mxu0 0
  %542 = vmatpush1.bf16.msra.mxu0 %v511
  %543 = vmatprep.subr.bf16.mxu0 0
  %544 = vmatpush2.bf16.msra.mxu0 0
  %545 = vmatprep.subr.bf16.mxu0 0
  %546 = vmatpush2.bf16.msra.mxu0 0
  %547 = vmatprep.subr.bf16.mxu0 0
  %548 = vmatpush2.bf16.msra.mxu0 0
  %549 = vmatprep.subr.bf16.mxu0 0
  %550 = vmatpush2.bf16.msra.mxu0 0
  %551 = vmatprep.subr.bf16.mxu0 0
  %552 = vmatpush2.bf16.msra.mxu0 0
  %553 = vmatprep.subr.bf16.mxu0 0
  %554 = vmatpush2.bf16.msra.mxu0 0
  %555 = vmatprep.subr.bf16.mxu0 0
  %556 = vmatpush2.bf16.msra.mxu0 0
  %557 = vmatprep.subr.bf16.mxu0 0
  %558 = vmatpush2.bf16.msra.mxu0 0
  %559 = vmatprep.mubr.bf16.mxu0 0
  %560 = vmatmul.mubr.bf16.gmra.mxu0 %v463
  %v561 = vpop.f32.mrf.mxu0
  %v562 = vadd.f32 0.0, %v561
  %v563 = vpop.f32.mrf.mxu0
  %v564 = vpop.f32.mrf.mxu0
  %v565 = vadd.f32 0.0, %v564
  %v566 = vpop.f32.mrf.mxu0
  %567 = vmatprep.mubr.bf16.mxu0 0
  %568 = vmatmul.mubr.bf16.gmra.mxu0 %v464
  %v569 = vpop.f32.mrf.mxu0
  %v570 = vadd.f32 0.0, %v569
  %v571 = vpop.f32.mrf.mxu0
  %v572 = vpop.f32.mrf.mxu0
  %v573 = vadd.f32 0.0, %v572
  %v574 = vpop.f32.mrf.mxu0
  %575 = vmatprep.mubr.bf16.mxu0 0
  %576 = vmatmul.mubr.bf16.gmra.mxu0 %v465
  %v577 = vpop.f32.mrf.mxu0
  %v578 = vadd.f32 0.0, %v577
  %v579 = vpop.f32.mrf.mxu0
  %v580 = vpop.f32.mrf.mxu0
  %v581 = vadd.f32 0.0, %v580
  %v582 = vpop.f32.mrf.mxu0
  %583 = vmatprep.mubr.bf16.mxu0 0
  %584 = vmatmul.mubr.bf16.gmra.mxu0 %v466
  %v585 = vpop.f32.mrf.mxu0
  %v586 = vadd.f32 0.0, %v585
  %v587 = vpop.f32.mrf.mxu0
  %v588 = vpop.f32.mrf.mxu0
  %v589 = vadd.f32 0.0, %v588
  %v590 = vpop.f32.mrf.mxu0
  %591 = vmatprep.mubr.bf16.mxu0 0
  %592 = vmatmul.mubr.bf16.gmra.mxu0 %v467
  %v593 = vpop.f32.mrf.mxu0
  %v594 = vadd.f32 0.0, %v593
  %v595 = vpop.f32.mrf.mxu0
  %v596 = vpop.f32.mrf.mxu0
  %v597 = vadd.f32 0.0, %v596
  %v598 = vpop.f32.mrf.mxu0
  %599 = vmatprep.mubr.bf16.mxu0 0
  %600 = vmatmul.mubr.bf16.gmra.mxu0 %v468
  %v601 = vpop.f32.mrf.mxu0
  %v602 = vadd.f32 0.0, %v601
  %v603 = vpop.f32.mrf.mxu0
  %v604 = vpop.f32.mrf.mxu0
  %v605 = vadd.f32 0.0, %v604
  %v606 = vpop.f32.mrf.mxu0
  %607 = vmatprep.mubr.bf16.mxu0 0
  %608 = vmatmul.mubr.bf16.gmra.mxu0 %v469
  %v609 = vpop.f32.mrf.mxu0
  %v610 = vadd.f32 0.0, %v609
  %v611 = vpop.f32.mrf.mxu0
  %v612 = vpop.f32.mrf.mxu0
  %v613 = vadd.f32 0.0, %v612
  %v614 = vpop.f32.mrf.mxu0
  %615 = vmatprep.mubr.bf16.mxu0 0
  %616 = vmatmul.mubr.bf16.gmra.mxu0 %v470
  %v617 = vpop.f32.mrf.mxu0
  %v618 = vadd.f32 0.0, %v617
  %v619 = vpop.f32.mrf.mxu0
  %v620 = vpop.f32.mrf.mxu0
  %v621 = vadd.f32 0.0, %v620
  %v622 = vpop.f32.mrf.mxu0
  %623 = vdwg.mxu0
  %v624 = vadd.f32 %v379, %v562
  %v625 = vadd.f32 %v380, %v565
  %v626 = vadd.f32 %v381, %v570
  %v627 = vadd.f32 %v382, %v573
  %v628 = vadd.f32 %v383, %v578
  %v629 = vadd.f32 %v384, %v581
  %v630 = vadd.f32 %v385, %v586
  %v631 = vadd.f32 %v386, %v589
  %v632 = vadd.f32 %v387, %v594
  %v633 = vadd.f32 %v388, %v597
  %v634 = vadd.f32 %v389, %v602
  %v635 = vadd.f32 %v390, %v605
  %v636 = vadd.f32 %v391, %v610
  %v637 = vadd.f32 %v392, %v613
  %v638 = vadd.f32 %v393, %v618
  %v639 = vadd.f32 %v394, %v621
  %640 = vst [vmem:[#allocation3] sm:$0xff] %v624
  %641 = vst [vmem:[#allocation3 + $0x8] sm:$0xff] %v625
  %642 = vst [vmem:[#allocation3 + $0x10] sm:$0xff] %v626
  %643 = vst [vmem:[#allocation3 + $0x18] sm:$0xff] %v627
  %644 = vst [vmem:[#allocation3 + $0x20] sm:$0xff] %v628
  %645 = vst [vmem:[#allocation3 + $0x28] sm:$0xff] %v629
  %646 = vst [vmem:[#allocation3 + $0x30] sm:$0xff] %v630
  %647 = vst [vmem:[#allocation3 + $0x38] sm:$0xff] %v631
  %648 = vst [vmem:[#allocation3 + $0x40] sm:$0xff] %v632
  %649 = vst [vmem:[#allocation3 + $0x48] sm:$0xff] %v633
  %650 = vst [vmem:[#allocation3 + $0x50] sm:$0xff] %v634
  %651 = vst [vmem:[#allocation3 + $0x58] sm:$0xff] %v635
  %652 = vst [vmem:[#allocation3 + $0x60] sm:$0xff] %v636
  %653 = vst [vmem:[#allocation3 + $0x68] sm:$0xff] %v637
  %654 = vst [vmem:[#allocation3 + $0x70] sm:$0xff] %v638
  %655 = vst [vmem:[#allocation3 + $0x78] sm:$0xff] %v639
  // Predicated region
  $region26: #{_gcn_forward_impl.1} parent=0 // pred_check
    %p656 = pneg %p359
  $region27: #{_gcn_forward_impl.1} parent=0 // pred_check_branch
    %658 = sbr.rel (%p656) target = $region29
  $region28: #{_gcn_forward_impl.1} parent=0 // pred_region
    %v659 = vld [vmem:[#allocation3] sm:$0xff]
    %v660 = vld [vmem:[#allocation3 + $0x8] sm:$0xff]
    %v661 = vld [vmem:[#allocation3 + $0x10] sm:$0xff]
    %v662 = vld [vmem:[#allocation3 + $0x18] sm:$0xff]
    %v663 = vld [vmem:[#allocation3 + $0x20] sm:$0xff]
    %v664 = vld [vmem:[#allocation3 + $0x28] sm:$0xff]
    %v665 = vld [vmem:[#allocation3 + $0x30] sm:$0xff]
    %v666 = vld [vmem:[#allocation3 + $0x38] sm:$0xff]
    %v667 = vld [vmem:[#allocation3 + $0x40] sm:$0xff]
    %v668 = vld [vmem:[#allocation3 + $0x48] sm:$0xff]
    %v669 = vld [vmem:[#allocation3 + $0x50] sm:$0xff]
    %v670 = vld [vmem:[#allocation3 + $0x58] sm:$0xff]
    %v671 = vld [vmem:[#allocation3 + $0x60] sm:$0xff]
    %v672 = vld [vmem:[#allocation3 + $0x68] sm:$0xff]
    %v673 = vld [vmem:[#allocation3 + $0x70] sm:$0xff]
    %v674 = vld [vmem:[#allocation3 + $0x78] sm:$0xff]
    %v675 = vld [vmem:[%s3] sm:$0x1]
    %v677 = vlaneseq
    %v678 = vshrl.u32 %v677, 7
    %v679 = vsub.s32 0, %v678
    %v680 = vrot.slane %v675, %v679
    %v682 = vadd.f32 %v659, %v680
    %v683 = vadd.f32 %v660, %v680
    %v684 = vadd.f32 %v661, %v680
    %v685 = vadd.f32 %v662, %v680
    %v686 = vadd.f32 %v663, %v680
    %v687 = vadd.f32 %v664, %v680
    %v688 = vadd.f32 %v665, %v680
    %v689 = vadd.f32 %v666, %v680
    %v690 = vadd.f32 %v667, %v680
    %v691 = vadd.f32 %v668, %v680
    %v692 = vadd.f32 %v669, %v680
    %v693 = vadd.f32 %v670, %v680
    %v694 = vadd.f32 %v671, %v680
    %v695 = vadd.f32 %v672, %v680
    %v696 = vadd.f32 %v673, %v680
    %v697 = vadd.f32 %v674, %v680
    %698 = vst [vmem:[%s4] sm:$0xff] %v682
    %699 = vst [vmem:[%s4 + $0x8] sm:$0xff] %v683
    %700 = vst [vmem:[%s4 + $0x10] sm:$0xff] %v684
    %701 = vst [vmem:[%s4 + $0x18] sm:$0xff] %v685
    %702 = vst [vmem:[%s4 + $0x20] sm:$0xff] %v686
    %703 = vst [vmem:[%s4 + $0x28] sm:$0xff] %v687
    %704 = vst [vmem:[%s4 + $0x30] sm:$0xff] %v688
    %705 = vst [vmem:[%s4 + $0x38] sm:$0xff] %v689
    %706 = vst [vmem:[%s4 + $0x40] sm:$0xff] %v690
    %707 = vst [vmem:[%s4 + $0x48] sm:$0xff] %v691
    %708 = vst [vmem:[%s4 + $0x50] sm:$0xff] %v692
    %709 = vst [vmem:[%s4 + $0x58] sm:$0xff] %v693
    %710 = vst [vmem:[%s4 + $0x60] sm:$0xff] %v694
    %711 = vst [vmem:[%s4 + $0x68] sm:$0xff] %v695
    %712 = vst [vmem:[%s4 + $0x70] sm:$0xff] %v696
    %713 = vst [vmem:[%s4 + $0x78] sm:$0xff] %v697
  $region29: #{_gcn_forward_impl.1} parent=0 // pred_fallthru
    _
  // Predicated region
  $region30: #{_gcn_forward_impl.1} parent=0 // pred_check
    _
  $region31: #{_gcn_forward_impl.1} parent=0 // pred_check_branch
    %715 = sbr.rel (0) target = $region33
  $region32: #{_gcn_forward_impl.1} parent=0 // pred_region
    _
  $region33: #{_gcn_forward_impl.1} parent=0 // pred_fallthru
    _
  // Predicated region
  $region34: #{_gcn_forward_impl.1} parent=0 // pred_check
    _
  $region35: #{_gcn_forward_impl.1} parent=0 // pred_check_branch
    %717 = sbr.rel (0) target = $region37
  $region36: #{_gcn_forward_impl.1} parent=0 // pred_region
    _
  $region37: #{_gcn_forward_impl.1} parent=0 // pred_fallthru
    _

</llo_original>
